<compile_context>
chip_gen: v5e
topology: v5e:2x2
jax: 0.10.0
libtpu: 0.0.40
codegen_flags: <defaults>
</compile_context>

<pallas_src>
import functools

import jax
import jax.numpy as jnp
from jax import lax
from jax.experimental import pallas as pl
from jax.experimental.pallas import tpu as pltpu

# Above v5e's 16 MiB scoped default, comfortably under v7x's 64 MiB physical.
_VMEM_LIMIT_BYTES = 32 * 1024 * 1024


def _pick_tile(dim, target, align):
    """Largest tile <= target that divides `dim` and is a multiple of `align`.

    Falls back to the full dim (always a legal block shape) when `dim` is not
    a multiple of `align`."""
    if dim % align != 0:
        return dim
    t = min(target, dim)
    t -= t % align
    while t > align and dim % t != 0:
        t -= align
    return t


# ---------------------------------------------------------------------------
# Tiled linear (x @ W (+ b)) kernels
# ---------------------------------------------------------------------------
def _matmul_kernel(x_ref, w_ref, o_ref, acc_ref):
    @pl.when(pl.program_id(2) == 0)
    def _init():
        acc_ref[...] = jnp.zeros_like(acc_ref)

    acc_ref[...] += jnp.dot(x_ref[...], w_ref[...],
                            preferred_element_type=jnp.float32)

    @pl.when(pl.program_id(2) == pl.num_programs(2) - 1)
    def _done():
        o_ref[...] = acc_ref[...].astype(o_ref.dtype)


def _matmul_bias_kernel(x_ref, w_ref, b_ref, o_ref, acc_ref):
    @pl.when(pl.program_id(2) == 0)
    def _init():
        acc_ref[...] = jnp.zeros_like(acc_ref)

    acc_ref[...] += jnp.dot(x_ref[...], w_ref[...],
                            preferred_element_type=jnp.float32)

    @pl.when(pl.program_id(2) == pl.num_programs(2) - 1)
    def _done():  # bias added once, in the epilogue only
        o_ref[...] = (acc_ref[...] + b_ref[...].astype(jnp.float32)
                      ).astype(o_ref.dtype)


def pallas_linear(x2d, w, b=None, *, tm_target=256, tn_target=256, tk_target=256):
    """(M, K) @ (K, Nout) (+ b) with a K-accumulating tiled Pallas matmul."""
    M, K = x2d.shape
    K2, Nout = w.shape
    assert K == K2, (K, K2)

    tm = _pick_tile(M, tm_target, 8)       # second-minor dims: multiple of 8
    tn = _pick_tile(Nout, tn_target, 128)  # minor dims: multiple of 128
    tk = _pick_tile(K, tk_target, 128)
    grid = (M // tm, Nout // tn, K // tk)  # reduction axis last

    x_spec = pl.BlockSpec((tm, tk), lambda i, j, k: (i, k))
    w_spec = pl.BlockSpec((tk, tn), lambda i, j, k: (k, j))
    o_spec = pl.BlockSpec((tm, tn), lambda i, j, k: (i, j))

    cparams = pltpu.CompilerParams(
        dimension_semantics=("parallel", "parallel", "arbitrary"),
        vmem_limit_bytes=_VMEM_LIMIT_BYTES)
    out_shape = jax.ShapeDtypeStruct((M, Nout), x2d.dtype)
    scratch = [pltpu.VMEM((tm, tn), jnp.float32)]

    if b is None:
        return pl.pallas_call(
            _matmul_kernel, grid=grid,
            in_specs=[x_spec, w_spec], out_specs=o_spec,
            out_shape=out_shape, scratch_shapes=scratch,
            compiler_params=cparams,
        )(x2d, w)

    b2d = b.reshape(1, Nout)
    b_spec = pl.BlockSpec((1, tn), lambda i, j, k: (0, j))
    return pl.pallas_call(
        _matmul_bias_kernel, grid=grid,
        in_specs=[x_spec, w_spec, b_spec], out_specs=o_spec,
        out_shape=out_shape, scratch_shapes=scratch,
        compiler_params=cparams,
    )(x2d, w, b2d)


# ---------------------------------------------------------------------------
# Flash-style multi-head attention kernel (all heads per step, KV-tiled)
# ---------------------------------------------------------------------------
def _flash_mha_kernel(q_ref, k_ref, v_ref, o_ref, m_sc, l_sc, acc_sc,
                      *, num_heads, head_dim, scale):
    ki = pl.program_id(2)

    @pl.when(ki == 0)
    def _init():
        m_sc[...] = jnp.full_like(m_sc, -jnp.inf)
        l_sc[...] = jnp.zeros_like(l_sc)
        acc_sc[...] = jnp.zeros_like(acc_sc)

    # Unrolled loop over heads: H matmul pairs per grid step instead of one
    # tiny head per step; q/k/v stay in their input dtype on the MXU.
    for h in range(num_heads):
        sl = slice(h * head_dim, (h + 1) * head_dim)
        qh = q_ref[0, :, sl] * scale                      # (tq, Dh), scale on q
        kh = k_ref[0, :, sl]                              # (tk, Dh)
        vh = v_ref[0, :, sl]                              # (tk, Dh)

        # QK^T without an explicit transpose: contract the Dh axis of both.
        s = lax.dot_general(qh, kh, (((1,), (1,)), ((), ())),
                            preferred_element_type=jnp.float32)   # (tq, tk)

        m_prev = m_sc[h]                                           # (tq, 1)
        m_new = jnp.maximum(m_prev, jnp.max(s, axis=-1, keepdims=True))
        alpha = jnp.exp(m_prev - m_new)
        p = jnp.exp(s - m_new)                                     # (tq, tk) f32
        l_sc[h] = alpha * l_sc[h] + jnp.sum(p, axis=-1, keepdims=True)
        pv = jnp.dot(p.astype(vh.dtype), vh,
                     preferred_element_type=jnp.float32)           # (tq, Dh)
        acc_sc[h] = alpha * acc_sc[h] + pv
        m_sc[h] = m_new

    @pl.when(ki == pl.num_programs(2) - 1)
    def _finalize():
        for h in range(num_heads):
            sl = slice(h * head_dim, (h + 1) * head_dim)
            l = l_sc[h]
            inv = pl.reciprocal(l, approx=True)
            inv = inv * (2.0 - l * inv)            # one Newton step for accuracy
            o_ref[0, :, sl] = (acc_sc[h] * inv).astype(o_ref.dtype)


def pallas_flash_mha(qkv, num_heads, *, q_tile=128, kv_tile=128):
    """qkv: (B, N, 3C) channel-packed as (3, H, Dh).  Returns (B, N, C)."""
    B, N, C3 = qkv.shape
    C = C3 // 3
    H = num_heads
    Dh = C // H
    scale = Dh ** -0.5

    tq = _pick_tile(N, q_tile, 8)
    tk = _pick_tile(N, kv_tile, 8)
    grid = (B, N // tq, N // tk)   # KV axis innermost / "arbitrary"

    if C % 128 == 0:
        # Fused path: read q/k/v directly out of the channel-packed qkv tensor
        # via the index_map's last block coordinate (0/1/2) -> no wrapper-side
        # slicing or transposes, no extra HBM round trips.
        q_spec = pl.BlockSpec((1, tq, C), lambda b, qi, ki: (b, qi, 0))
        k_spec = pl.BlockSpec((1, tk, C), lambda b, qi, ki: (b, ki, 1))
        v_spec = pl.BlockSpec((1, tk, C), lambda b, qi, ki: (b, ki, 2))
        args = (qkv, qkv, qkv)
    else:
        # TODO(synk): lane-unaligned (C % 128 != 0) fused slicing of (B,N,3C) is
        # not expressed; fall back to three wrapper slices (full-last-dim blocks).
        q = lax.slice_in_dim(qkv, 0, C, axis=2)
        k = lax.slice_in_dim(qkv, C, 2 * C, axis=2)
        v = lax.slice_in_dim(qkv, 2 * C, 3 * C, axis=2)
        q_spec = pl.BlockSpec((1, tq, C), lambda b, qi, ki: (b, qi, 0))
        k_spec = pl.BlockSpec((1, tk, C), lambda b, qi, ki: (b, ki, 0))
        v_spec = pl.BlockSpec((1, tk, C), lambda b, qi, ki: (b, ki, 0))
        args = (q, k, v)

    o_spec = pl.BlockSpec((1, tq, C), lambda b, qi, ki: (b, qi, 0))
    kernel = functools.partial(_flash_mha_kernel, num_heads=H,
                               head_dim=Dh, scale=scale)

    return pl.pallas_call(
        kernel,
        grid=grid,
        in_specs=[q_spec, k_spec, v_spec],
        out_specs=o_spec,
        out_shape=jax.ShapeDtypeStruct((B, N, C), qkv.dtype),
        scratch_shapes=[
            pltpu.VMEM((H, tq, 1), jnp.float32),    # running max  m
            pltpu.VMEM((H, tq, 1), jnp.float32),    # running sum  l
            pltpu.VMEM((H, tq, Dh), jnp.float32),   # output accumulator
        ],
        compiler_params=pltpu.CompilerParams(
            dimension_semantics=("parallel", "parallel", "arbitrary"),
            vmem_limit_bytes=_VMEM_LIMIT_BYTES),
    )(*args)


# ---------------------------------------------------------------------------
# Full forward pass (matches Attention.forward with dropouts = 0)
# ---------------------------------------------------------------------------
def attention_forward(x, w_qkv, w_proj, b_proj, num_heads):
    B, N, C = x.shape
    # qkv projection (qkv_bias=False): (B*N, C) @ (C, 3C)
    qkv = pallas_linear(x.reshape(B * N, C), w_qkv)              # (B*N, 3C)
    # Flash attention consumes the channel-packed layout directly (free reshape).
    o = pallas_flash_mha(qkv.reshape(B, N, 3 * C), num_heads)    # (B, N, C)
    # Output projection (bias=True); proj_drop is identity.
    y = pallas_linear(o.reshape(B * N, C), w_proj, b_proj)
    return y.reshape(B, N, C)


# ---------------------------------------------------------------------------
# Pure-JAX reference for verification
# ---------------------------------------------------------------------------
def reference_forward(x, w_qkv, w_proj, b_proj, num_heads):
    B, N, C = x.shape
    H = num_heads
    Dh = C // H
    qkv = (x @ w_qkv).reshape(B, N, 3, H, Dh).transpose(2, 0, 3, 1, 4)
    q, k, v = qkv[0], qkv[1], qkv[2]
    attn = jnp.einsum("bhnd,bhmd->bhnm", q, k) * (Dh ** -0.5)
    attn = jax.nn.softmax(attn, axis=-1)
    o = jnp.einsum("bhnm,bhmd->bhnd", attn, v).transpose(0, 2, 1, 3).reshape(B, N, C)
    return o @ w_proj + b_proj


# ---------------------------------------------------------------------------
if __name__ == "__main__":
    key = jax.random.PRNGKey(0)

    # --- standalone check of the K-accumulating tiled linear (2x2x2 grid) ----
    ka, kw, kb0 = jax.random.split(key, 3)
    a = jax.random.normal(ka, (128, 256), dtype=jnp.float32)
    wl = jax.random.uniform(kw, (256, 256), jnp.float32, -0.06, 0.06)
    bl = jax.random.uniform(kb0, (256,), jnp.float32, -0.06, 0.06)
    yl = pallas_linear(a, wl, bl, tm_target=64, tn_target=128, tk_target=128)
    assert jnp.allclose(yl, a @ wl + bl, atol=1e-3, rtol=1e-3), "linear mismatch"

    # --- full Attention forward ---------------------------------------------
    B, N, C = 2, 256, 128          # 16x16 spatial tokens, dim=128
    num_heads = 8                  # module default -> head_dim = 16

    kx, kq, kp, kb = jax.random.split(jax.random.PRNGKey(0), 4)
    bound = 1.0 / (C ** 0.5)       # ~ PyTorch nn.Linear init range
    x = jax.random.normal(kx, (B, N, C), dtype=jnp.float32)
    w_qkv = jax.random.uniform(kq, (C, 3 * C), jnp.float32, -bound, bound)
    w_proj = jax.random.uniform(kp, (C, C), jnp.float32, -bound, bound)
    b_proj = jax.random.uniform(kb, (C,), jnp.float32, -bound, bound)

    fwd = jax.jit(functools.partial(attention_forward, num_heads=num_heads))
    out = jax.block_until_ready(fwd(x, w_qkv, w_proj, b_proj))

    ref = reference_forward(x, w_qkv, w_proj, b_proj, num_heads)
    assert out.shape == (B, N, C)
    assert jnp.allclose(out, ref, atol=1e-3, rtol=1e-3), (
        "mismatch vs reference: max err %f" % float(jnp.max(jnp.abs(out - ref))))

    print("KERNEL_OK")
</pallas_src>

<mosaic_0001>
module attributes {stable_mosaic.version = 11 : i64} {
  func.func @_matmul_bias_kernel(%arg0: i32, %arg1: i32, %arg2: i32, %arg3: memref<64x128xf32, #tpu.memory_space<vmem>>, %arg4: memref<128x128xf32, #tpu.memory_space<vmem>>, %arg5: memref<1x128xf32, #tpu.memory_space<vmem>>, %arg6: memref<64x128xf32, #tpu.memory_space<vmem>>, %arg7: memref<64x128xf32, #tpu.memory_space<vmem>>) attributes {dimension_semantics = [#tpu.dimension_semantics<parallel>, #tpu.dimension_semantics<parallel>, #tpu.dimension_semantics<arbitrary>], iteration_bounds = array<i64: 2, 2, 2>, scalar_prefetch = 0 : i64, scratch_operands = 1 : i64, tpu.core_type = #tpu.core_type<tc>, window_params = [{transform_indices = @transform_0, window_bounds = array<i64: 64, 128>}, {transform_indices = @transform_1, window_bounds = array<i64: 128, 128>}, {transform_indices = @transform_2, window_bounds = array<i64: 1, 128>}, {transform_indices = @transform_3, window_bounds = array<i64: 64, 128>}]} {
    %c0_i32 = arith.constant 0 : i32
    %0 = arith.cmpi eq, %arg2, %c0_i32 : i32
    %1 = arith.extui %0 : i1 to i32
    %c0_i32_0 = arith.constant 0 : i32
    %2 = arith.cmpi ne, %1, %c0_i32_0 : i32
    scf.if %2 {
      %cst_9 = arith.constant 0.000000e+00 : f32
      %12 = vector.broadcast %cst_9 : f32 to vector<64x128xf32>
      %c0_10 = arith.constant 0 : index
      %c0_11 = arith.constant 0 : index
      %13 = vector.load %arg7[%c0_10, %c0_11] : memref<64x128xf32, #tpu.memory_space<vmem>>, vector<64x128xf32>
      tpu.vector_store %arg7[%c0_10, %c0_11], %12 {strides = array<i32>} : memref<64x128xf32, #tpu.memory_space<vmem>>, vector<64x128xf32>,
    } else {
    }
    %c0 = arith.constant 0 : index
    %c0_1 = arith.constant 0 : index
    %3 = vector.load %arg7[%c0, %c0_1] : memref<64x128xf32, #tpu.memory_space<vmem>>, vector<64x128xf32>
    %c0_2 = arith.constant 0 : index
    %c0_3 = arith.constant 0 : index
    %4 = vector.load %arg3[%c0_2, %c0_3] : memref<64x128xf32, #tpu.memory_space<vmem>>, vector<64x128xf32>
    %c0_4 = arith.constant 0 : index
    %c0_5 = arith.constant 0 : index
    %5 = vector.load %arg4[%c0_4, %c0_5] : memref<128x128xf32, #tpu.memory_space<vmem>>, vector<128x128xf32>
    %cst = arith.constant dense<0.000000e+00> : vector<64x128xf32>
    %6 = tpu.matmul %4, %5, %cst {dimension_numbers = #tpu.dot_dimension_numbers<[1], [0], [0], [1], [0, 0, 1, 1], [], []>} : vector<64x128xf32>, vector<128x128xf32>, vector<64x128xf32> -> vector<64x128xf32>
    %7 = arith.addf %3, %6 : vector<64x128xf32>
    %c0_6 = arith.constant 0 : index
    %c0_7 = arith.constant 0 : index
    %8 = vector.load %arg7[%c0_6, %c0_7] : memref<64x128xf32, #tpu.memory_space<vmem>>, vector<64x128xf32>
    tpu.vector_store %arg7[%c0_6, %c0_7], %7 {strides = array<i32>} : memref<64x128xf32, #tpu.memory_space<vmem>>, vector<64x128xf32>,
    %c1_i32 = arith.constant 1 : i32
    %9 = arith.cmpi eq, %arg2, %c1_i32 : i32
    %10 = arith.extui %9 : i1 to i32
    %c0_i32_8 = arith.constant 0 : i32
    %11 = arith.cmpi ne, %10, %c0_i32_8 : i32
    scf.if %11 {
      %c0_9 = arith.constant 0 : index
      %c0_10 = arith.constant 0 : index
      %12 = vector.load %arg7[%c0_9, %c0_10] : memref<64x128xf32, #tpu.memory_space<vmem>>, vector<64x128xf32>
      %c0_11 = arith.constant 0 : index
      %c0_12 = arith.constant 0 : index
      %13 = vector.load %arg5[%c0_11, %c0_12] : memref<1x128xf32, #tpu.memory_space<vmem>>, vector<1x128xf32>
      %14 = vector.broadcast %13 : vector<1x128xf32> to vector<64x128xf32>
      %15 = arith.addf %12, %14 : vector<64x128xf32>
      %c0_13 = arith.constant 0 : index
      %c0_14 = arith.constant 0 : index
      %16 = vector.load %arg6[%c0_13, %c0_14] : memref<64x128xf32, #tpu.memory_space<vmem>>, vector<64x128xf32>
      tpu.vector_store %arg6[%c0_13, %c0_14], %15 {strides = array<i32>} : memref<64x128xf32, #tpu.memory_space<vmem>>, vector<64x128xf32>,
    } else {
    }
    return
  }
  func.func @transform_0(%arg0: i32, %arg1: i32, %arg2: i32) -> (i32, i32) {
    %c0_i32 = arith.constant 0 : i32
    return %arg0, %arg2 : i32, i32
  }
  func.func @transform_1(%arg0: i32, %arg1: i32, %arg2: i32) -> (i32, i32) {
    %c0_i32 = arith.constant 0 : i32
    return %arg2, %arg1 : i32, i32
  }
  func.func @transform_2(%arg0: i32, %arg1: i32, %arg2: i32) -> (i32, i32) {
    %c0_i32 = arith.constant 0 : i32
    %c0_i32_0 = arith.constant 0 : i32
    return %c0_i32, %arg1 : i32, i32
  }
  func.func @transform_3(%arg0: i32, %arg1: i32, %arg2: i32) -> (i32, i32) {
    %c0_i32 = arith.constant 0 : i32
    return %arg0, %arg1 : i32, i32
  }
}

</mosaic_0001>

<llo_original>
// kernel: tpu_custom_call.1
$region0: #{tpu_custom_call.1}
  #allocation0 [shape = 'u32[]', space=smem, size = 0x4, offset = 0x4, fixed_abs, tag = 'smem constant byte address 0x4 - core index']
  #allocation1 [shape = 'u32[72,128]{1,0:T(1,128)}', space=vmem, size = 0x9000, scoped, tag = 'internal scratch']
  #allocation2 [shape = 'f32[64,128]{1,0:T(8,128)}', space=vmem, size = 0x8000, scoped, tag = 'scratch operand']
  %s0 = inlined_call_operand.hbm [shape: f32[128,256], index: 0, kind: input, shape index: {}]
  %s1 = inlined_call_operand.hbm [shape: f32[256,256], index: 1, kind: input, shape index: {}]
  %s2 = inlined_call_operand.hbm [shape: f32[1,256], index: 2, kind: input, shape index: {}]
  %s3 = inlined_call_operand.hbm [shape: f32[128,256], index: 3, kind: output, shape index: {}]
  %s4 = sld [smem:[#allocation0]]
  $region65: #{tpu_custom_call.1} parent=0
    _
  %s6 = ssub.s32 1, %s4
  %s7 = scalar_select 0, %s6, %s4
  $region1: #{tpu_custom_call.1} parent=0
    #allocation3 [shape = 'u8[65536]{0}', space=vmem, size = 0x10000, scoped, tag = 'input window, operand 0']
    #allocation4 [shape = 's32[2]{0}', space=sflag, size = 0x8, scoped, tag = 'scoped memory for tpu_custom_call.1']
    #allocation5 [shape = 's32[2]{0}', space=sflag, size = 0x8, scoped, tag = 'scoped memory for tpu_custom_call.1']
    #allocation6 [shape = 'u8[131072]{0}', space=vmem, size = 0x20000, scoped, tag = 'input window, operand 1']
    #allocation7 [shape = 's32[2]{0}', space=sflag, size = 0x8, scoped, tag = 'scoped memory for tpu_custom_call.1']
    #allocation8 [shape = 'u8[1024]{0}', space=vmem, size = 0x400, scoped, tag = 'input window, operand 2']
    #allocation9 [shape = 'u8[65536]{0}', space=vmem, size = 0x10000, scoped, tag = 'output window, operand 0']
    %8 = vsyncpa [#allocation4], 0
    %s9 = scalar_lea.sflag [#allocation4], 1
    %10 = vsyncpa %s9, 0
    %11 = vsyncpa [#allocation7], 0
    %s12 = scalar_lea.sflag [#allocation7], 1
    %13 = vsyncpa %s12, 0
    %14 = vsyncpa [#allocation5], 0
    %s15 = scalar_lea.sflag [#allocation5], 1
    %16 = vsyncpa %s15, 0
    loop: start=0, step=1, limit=10
    $region2: #{tpu_custom_call.1} parent=1 // loop_pre_header
      _
    $region3: #{tpu_custom_call.1} parent=1 // loop_header
      %s18 = sphi 0, %s22
      %p19 = scmp.ge.s32.totalorder %s18, 10
      %s25 = sphi 0, %s44
      %s26 = sphi 0, %s40
      %s27 = sphi 0, %s36
      %s28 = sphi 0, %s25
      %s29 = sphi 0, %s26
      %s30 = sphi 0, %s27
      %s31 = sphi 0, %s28
      %s32 = sphi 0, %s29
      %s33 = sphi 0, %s30
      %s49 = sphi 0, %s51
      %s52 = sphi 0, %s49
      %s53 = sphi 0, %s52
      %s69 = sphi 0, %s53
      %s77 = sphi 0, %s79
      %s80 = sphi 0, %s77
      %s81 = sphi 0, %s80
      %s97 = sphi 0, %s81
      %s103 = sphi 0, %s105
      %s106 = sphi 0, %s103
      %s107 = sphi 0, %s106
      %s123 = sphi 0, %s107
      %s131 = sphi 0, %s133
      %s134 = sphi 0, %s131
      %s135 = sphi 0, %s134
      %s151 = sphi 0, %s135
    $region4: #{tpu_custom_call.1} parent=1 // loop_header_branch
      %21 = sbr.rel (%p19) target = $region8
    $region5: #{tpu_custom_call.1} parent=1 // loop_body
      %s23 = ssub.s32 %s18, 1
      %s24 = ssub.s32 %s18, 2
      %s34 = sadd.s32 1, %s27
      %p35 = scmp.ge.s32.totalorder %s34, 2
      %s36 = scalar_select %p35, 0, %s34
      %s37 = sadd.s32 1, %s26
      %s38 = scalar_select %p35, %s37, %s26
      %p39 = scmp.ge.s32.totalorder %s38, 2
      %s40 = scalar_select %p39, 0, %s38
      %s41 = sadd.s32 1, %s25
      %s42 = scalar_select %p39, %s41, %s25
      %p43 = scmp.ge.s32.totalorder %s42, 2
      %s44 = scalar_select %p43, 0, %s42
      %s45 = ssub.s32 %s25, %s44
      %s46 = ssub.s32 %s27, %s36
      %s47 = sor.u32 %s45, %s46
      %p48 = scmp.eq.s32.totalorder %s47, 0
      %s50 = sadd.s32 %s49, 1
      %s51 = scalar_select %p48, %s49, %s50
      %p54 = pneg %p48
      %p55 = scmp.eq.s32.totalorder %s18, 7
      %p56 = por %p54, %p55
      %p57 = scmp.ne.s32.totalorder %s49, %s52
      %p58 = scmp.eq.s32.totalorder %s18, 0
      %p59 = por %p57, %p58
      %p60 = scmp.ne.s32.totalorder %s49, %s52
      %p61 = scmp.eq.s32.totalorder %s23, 7
      %p62 = por %p60, %p61
      %p63 = scmp.ne.s32.totalorder %s52, %s53
      %p64 = scmp.eq.s32.totalorder %s23, 0
      %p65 = por %p63, %p64
      %p66 = scmp.ne.s32.totalorder %s52, %s53
      %p67 = scmp.eq.s32.totalorder %s24, 7
      %p68 = por %p66, %p67
      %p70 = scmp.ne.s32.totalorder %s53, %s69
      %p71 = scmp.eq.s32.totalorder %s24, 0
      %p72 = por %p70, %p71
      %s73 = ssub.s32 %s27, %s36
      %s74 = ssub.s32 %s26, %s40
      %s75 = sor.u32 %s73, %s74
      %p76 = scmp.eq.s32.totalorder %s75, 0
      %s78 = sadd.s32 %s77, 1
      %s79 = scalar_select %p76, %s77, %s78
      %p82 = pneg %p76
      %p83 = scmp.eq.s32.totalorder %s18, 7
      %p84 = por %p82, %p83
      %p85 = scmp.ne.s32.totalorder %s77, %s80
      %p86 = scmp.eq.s32.totalorder %s18, 0
      %p87 = por %p85, %p86
      %p88 = scmp.ne.s32.totalorder %s77, %s80
      %p89 = scmp.eq.s32.totalorder %s23, 7
      %p90 = por %p88, %p89
      %p91 = scmp.ne.s32.totalorder %s80, %s81
      %p92 = scmp.eq.s32.totalorder %s23, 0
      %p93 = por %p91, %p92
      %p94 = scmp.ne.s32.totalorder %s80, %s81
      %p95 = scmp.eq.s32.totalorder %s24, 7
      %p96 = por %p94, %p95
      %p98 = scmp.ne.s32.totalorder %s81, %s97
      %p99 = scmp.eq.s32.totalorder %s24, 0
      %p100 = por %p98, %p99
      %s101 = ssub.s32 %s26, %s40
      %p102 = scmp.eq.s32.totalorder %s101, 0
      %s104 = sadd.s32 %s103, 1
      %s105 = scalar_select %p102, %s103, %s104
      %p108 = pneg %p102
      %p109 = scmp.eq.s32.totalorder %s18, 7
      %p110 = por %p108, %p109
      %p111 = scmp.ne.s32.totalorder %s103, %s106
      %p112 = scmp.eq.s32.totalorder %s18, 0
      %p113 = por %p111, %p112
      %p114 = scmp.ne.s32.totalorder %s103, %s106
      %p115 = scmp.eq.s32.totalorder %s23, 7
      %p116 = por %p114, %p115
      %p117 = scmp.ne.s32.totalorder %s106, %s107
      %p118 = scmp.eq.s32.totalorder %s23, 0
      %p119 = por %p117, %p118
      %p120 = scmp.ne.s32.totalorder %s106, %s107
      %p121 = scmp.eq.s32.totalorder %s24, 7
      %p122 = por %p120, %p121
      %p124 = scmp.ne.s32.totalorder %s107, %s123
      %p125 = scmp.eq.s32.totalorder %s24, 0
      %p126 = por %p124, %p125
      %s127 = ssub.s32 %s25, %s44
      %s128 = ssub.s32 %s26, %s40
      %s129 = sor.u32 %s127, %s128
      %p130 = scmp.eq.s32.totalorder %s129, 0
      %s132 = sadd.s32 %s131, 1
      %s133 = scalar_select %p130, %s131, %s132
      %p136 = pneg %p130
      %p137 = scmp.eq.s32.totalorder %s18, 7
      %p138 = por %p136, %p137
      %p139 = scmp.ne.s32.totalorder %s131, %s134
      %p140 = scmp.eq.s32.totalorder %s18, 0
      %p141 = por %p139, %p140
      %p142 = scmp.ne.s32.totalorder %s131, %s134
      %p143 = scmp.eq.s32.totalorder %s23, 7
      %p144 = por %p142, %p143
      %p145 = scmp.ne.s32.totalorder %s134, %s135
      %p146 = scmp.eq.s32.totalorder %s23, 0
      %p147 = por %p145, %p146
      %p148 = scmp.ne.s32.totalorder %s134, %s135
      %p149 = scmp.eq.s32.totalorder %s24, 7
      %p150 = por %p148, %p149
      %p152 = scmp.ne.s32.totalorder %s135, %s151
      %p153 = scmp.eq.s32.totalorder %s24, 0
      %p154 = por %p152, %p153
      %p155 = scmp.le.s32.totalorder 1, %s18
      %p156 = scmp.lt.s32.totalorder %s18, 9
      %p157 = pnand %p155, %p156
      %p158 = pneg %p157
      // Predicated region
      $region9: #{tpu_custom_call.1} parent=5 // pred_check
        _
      $region10: #{tpu_custom_call.1} parent=5 // pred_check_branch
        %160 = sbr.rel (%p157) target = $region12
      $region11: #{tpu_custom_call.1} parent=5 // pred_region
        %s161 = ssub.s32 %s18, 1
      $region12: #{tpu_custom_call.1} parent=5 // pred_fallthru
        _
      %p162 = scmp.lt.s32.totalorder %s18, 8
      // Predicated region
      $region13: #{tpu_custom_call.1} parent=5 // pred_check
        %p163 = pneg %p162
      $region14: #{tpu_custom_call.1} parent=5 // pred_check_branch
        %165 = sbr.rel (%p163) target = $region16
      $region15: #{tpu_custom_call.1} parent=5 // pred_region
        // Predicated region
        $region17: #{tpu_custom_call.1} parent=15 // pred_check
          %p166 = pneg %p59
        $region18: #{tpu_custom_call.1} parent=15 // pred_check_branch
          %168 = sbr.rel (%p166) target = $region20
        $region19: #{tpu_custom_call.1} parent=15 // pred_region
          %s169 = sand.u32 %s49, 1
          %s170 = scalar_lea.sflag [#allocation4], %s169
          %s171 = sand.u32 %s49, 1
          %s172 = smul.addr %s171, 64
          %s173 = scalar_lea.vmem [#allocation3], %s172
          %s174 = smul.u32 8, %s25
          %176 = vsyncadd %s170, 0
          %s177 = smul.addr %s174, 2
          %s178 = sadd.s32 %s27, %s177
          %s179 = smul.addr %s178, 8
          %s180 = scalar_lea.hbm %s0, %s179
          %s181 = sshll.u32 %s180, 4
          %s182 = int_to_ptr.hbm [resolvable:$true] %s181
          %s183 = sshll.u32 %s173, 4
          %s184 = int_to_ptr.vmem [resolvable:$true] %s183
          %189 = dma.hbm_to_vmem [thread:$0]  %s182, 1024, %s184, %s170, 256, 128, 8
        $region20: #{tpu_custom_call.1} parent=15 // pred_fallthru
          _
        // Predicated region
        $region21: #{tpu_custom_call.1} parent=15 // pred_check
          %p190 = pneg %p87
        $region22: #{tpu_custom_call.1} parent=15 // pred_check_branch
          %192 = sbr.rel (%p190) target = $region24
        $region23: #{tpu_custom_call.1} parent=15 // pred_region
          %s193 = sand.u32 %s18, 1
          %s194 = scalar_lea.sflag [#allocation7], %s193
          %s195 = sand.u32 %s77, 1
          %s196 = smul.addr %s195, 128
          %s197 = scalar_lea.vmem [#allocation6], %s196
          %s198 = smul.u32 16, %s27
          %200 = vsyncadd %s194, 0
          %s201 = smul.addr %s198, 2
          %s202 = sadd.s32 %s26, %s201
          %s203 = smul.addr %s202, 8
          %s204 = scalar_lea.hbm %s1, %s203
          %s205 = sshll.u32 %s204, 4
          %s206 = int_to_ptr.hbm [resolvable:$true] %s205
          %s207 = sshll.u32 %s197, 4
          %s208 = int_to_ptr.vmem [resolvable:$true] %s207
          %213 = dma.hbm_to_vmem [thread:$0]  %s206, 2048, %s208, %s194, 256, 128, 8
        $region24: #{tpu_custom_call.1} parent=15 // pred_fallthru
          _
        // Predicated region
        $region25: #{tpu_custom_call.1} parent=15 // pred_check
          %p214 = pneg %p113
        $region26: #{tpu_custom_call.1} parent=15 // pred_check_branch
          %216 = sbr.rel (%p214) target = $region28
        $region27: #{tpu_custom_call.1} parent=15 // pred_region
          %s217 = sand.u32 %s18, 1
          %s218 = scalar_lea.sflag [#allocation7], %s217
          %s219 = sand.u32 %s103, 1
          %s220 = scalar_lea.vmem [#allocation8], %s219
          %222 = vsyncadd %s218, 0
          %s223 = scalar_lea.hbm %s2, %s26
          %s225 = sshll.u32 %s223, 4
          %s226 = int_to_ptr.hbm [resolvable:$true] %s225
          %s227 = sshll.u32 %s220, 4
          %s228 = int_to_ptr.vmem [resolvable:$true] %s227
          %230 = dma.hbm_to_vmem [thread:$0]  %s226, 16, %s228, %s218
        $region28: #{tpu_custom_call.1} parent=15 // pred_fallthru
          _
      $region16: #{tpu_custom_call.1} parent=5 // pred_fallthru
        _
      %p231 = scmp.le.s32.totalorder 1, %s18
      %p232 = scmp.lt.s32.totalorder %s18, 9
      %p233 = pnand %p231, %p232
      %p234 = pneg %p233
      // Predicated region
      $region29: #{tpu_custom_call.1} parent=5 // pred_check
        _
      $region30: #{tpu_custom_call.1} parent=5 // pred_check_branch
        %236 = sbr.rel (%p233) target = $region32
      $region31: #{tpu_custom_call.1} parent=5 // pred_region
        %s237 = ssub.s32 %s18, 1
        %s238 = sand.u32 %s52, 1
        %s239 = scalar_lea.sflag [#allocation4], %s238
        %s240 = sand.u32 %s52, 1
        %s241 = smul.addr %s240, 64
        %s242 = scalar_lea.vmem [#allocation3], %s241
        // Predicated region
        $region33: #{tpu_custom_call.1} parent=31 // pred_check
          %p243 = pneg %p65
        $region34: #{tpu_custom_call.1} parent=31 // pred_check_branch
          %245 = sbr.rel (%p243) target = $region36
        $region35: #{tpu_custom_call.1} parent=31 // pred_region
          %247 = dma.done %s239, 1024
        $region36: #{tpu_custom_call.1} parent=31 // pred_fallthru
          _
        %s248 = sand.u32 %s23, 1
        %s249 = scalar_lea.sflag [#allocation7], %s248
        %s250 = sand.u32 %s80, 1
        %s251 = smul.addr %s250, 128
        %s252 = scalar_lea.vmem [#allocation6], %s251
        // Predicated region
        $region37: #{tpu_custom_call.1} parent=31 // pred_check
          %p253 = pneg %p93
        $region38: #{tpu_custom_call.1} parent=31 // pred_check_branch
          %255 = sbr.rel (%p253) target = $region40
        $region39: #{tpu_custom_call.1} parent=31 // pred_region
          %257 = dma.done %s249, 2048
        $region40: #{tpu_custom_call.1} parent=31 // pred_fallthru
          _
        %s258 = sand.u32 %s23, 1
        %s259 = scalar_lea.sflag [#allocation7], %s258
        %s260 = sand.u32 %s106, 1
        %s261 = scalar_lea.vmem [#allocation8], %s260
        // Predicated region
        $region41: #{tpu_custom_call.1} parent=31 // pred_check
          %p262 = pneg %p119
        $region42: #{tpu_custom_call.1} parent=31 // pred_check_branch
          %264 = sbr.rel (%p262) target = $region44
        $region43: #{tpu_custom_call.1} parent=31 // pred_region
          %266 = dma.done %s259, 16
        $region44: #{tpu_custom_call.1} parent=31 // pred_fallthru
          _
        %s267 = sand.u32 %s52, 1
        %s268 = scalar_lea.sflag [#allocation4], %s267
        %s269 = sand.u32 %s52, 1
        %s270 = smul.addr %s269, 64
        %s271 = scalar_lea.vmem [#allocation3], %s270
        %p272 = pneg %p65
        %p273 = pneg %p62
        %s274 = sand.u32 %s23, 1
        %s275 = scalar_lea.sflag [#allocation7], %s274
        %s276 = sand.u32 %s80, 1
        %s277 = smul.addr %s276, 128
        %s278 = scalar_lea.vmem [#allocation6], %s277
        %p279 = pneg %p93
        %p280 = pneg %p90
        %s281 = sand.u32 %s23, 1
        %s282 = scalar_lea.sflag [#allocation7], %s281
        %s283 = sand.u32 %s106, 1
        %s284 = scalar_lea.vmem [#allocation8], %s283
        %p285 = pneg %p119
        %p286 = pneg %p116
        %p287 = pneg %p147
        %p288 = pneg %p144
        %s289 = sand.u32 %s134, 1
        %s290 = scalar_lea.sflag [#allocation5], %s289
        %s291 = sand.u32 %s134, 1
        %s292 = smul.addr %s291, 64
        %s293 = scalar_lea.vmem [#allocation9], %s292
        %s294 = smul.u32 8, %s28
        %s295 = smul.u32 16, %s30
        %s296 = smul.u32 8, %s28
        %p297 = scmp.eq.s32.totalorder %s30, 0
        // Predicated region
        $region45: #{tpu_custom_call.1} parent=31 // pred_check
          %p298 = pneg %p297
        $region46: #{tpu_custom_call.1} parent=31 // pred_check_branch
          %300 = sbr.rel (%p298) target = $region48
        $region47: #{tpu_custom_call.1} parent=31 // pred_region
          %301 = vst [vmem:[#allocation2] sm:$0xff] 0.0
          %302 = vst [vmem:[#allocation2 + $0x8] sm:$0xff] 0.0
          %303 = vst [vmem:[#allocation2 + $0x10] sm:$0xff] 0.0
          %304 = vst [vmem:[#allocation2 + $0x18] sm:$0xff] 0.0
          %305 = vst [vmem:[#allocation2 + $0x20] sm:$0xff] 0.0
          %306 = vst [vmem:[#allocation2 + $0x28] sm:$0xff] 0.0
          %307 = vst [vmem:[#allocation2 + $0x30] sm:$0xff] 0.0
          %308 = vst [vmem:[#allocation2 + $0x38] sm:$0xff] 0.0
        $region48: #{tpu_custom_call.1} parent=31 // pred_fallthru
          _
        %v309 = vld [vmem:[#allocation2] sm:$0xff]
        %v310 = vld [vmem:[#allocation2 + $0x8] sm:$0xff]
        %v311 = vld [vmem:[#allocation2 + $0x10] sm:$0xff]
        %v312 = vld [vmem:[#allocation2 + $0x18] sm:$0xff]
        %v313 = vld [vmem:[#allocation2 + $0x20] sm:$0xff]
        %v314 = vld [vmem:[#allocation2 + $0x28] sm:$0xff]
        %v315 = vld [vmem:[#allocation2 + $0x30] sm:$0xff]
        %v316 = vld [vmem:[#allocation2 + $0x38] sm:$0xff]
        %v317 = vld [vmem:[%s242] sm:$0xff]
        %v318 = vld [vmem:[%s242 + $0x8] sm:$0xff]
        %v319 = vld [vmem:[%s242 + $0x10] sm:$0xff]
        %v320 = vld [vmem:[%s242 + $0x18] sm:$0xff]
        %v321 = vld [vmem:[%s242 + $0x20] sm:$0xff]
        %v322 = vld [vmem:[%s242 + $0x28] sm:$0xff]
        %v323 = vld [vmem:[%s242 + $0x30] sm:$0xff]
        %v324 = vld [vmem:[%s242 + $0x38] sm:$0xff]
        %v325 = vld [vmem:[%s252] sm:$0xff]
        %v326 = vld [vmem:[%s252 + $0x8] sm:$0xff]
        %v327 = vld [vmem:[%s252 + $0x10] sm:$0xff]
        %v328 = vld [vmem:[%s252 + $0x18] sm:$0xff]
        %v329 = vld [vmem:[%s252 + $0x20] sm:$0xff]
        %v330 = vld [vmem:[%s252 + $0x28] sm:$0xff]
        %v331 = vld [vmem:[%s252 + $0x30] sm:$0xff]
        %v332 = vld [vmem:[%s252 + $0x38] sm:$0xff]
        %v333 = vld [vmem:[%s252 + $0x40] sm:$0xff]
        %v334 = vld [vmem:[%s252 + $0x48] sm:$0xff]
        %v335 = vld [vmem:[%s252 + $0x50] sm:$0xff]
        %v336 = vld [vmem:[%s252 + $0x58] sm:$0xff]
        %v337 = vld [vmem:[%s252 + $0x60] sm:$0xff]
        %v338 = vld [vmem:[%s252 + $0x68] sm:$0xff]
        %v339 = vld [vmem:[%s252 + $0x70] sm:$0xff]
        %v340 = vld [vmem:[%s252 + $0x78] sm:$0xff]
        %341 = vmatpush.msra.mxu0 %v340
        %342 = vmatpush.msra.mxu0 %v339
        %343 = vmatpush.msra.mxu0 %v338
        %344 = vmatpush.msra.mxu0 %v337
        %345 = vmatpush.msra.mxu0 %v336
        %346 = vmatpush.msra.mxu0 %v335
        %347 = vmatpush.msra.mxu0 %v334
        %348 = vmatpush.msra.mxu0 %v333
        %349 = vmatpush.msra.mxu0 %v332
        %350 = vmatpush.msra.mxu0 %v331
        %351 = vmatpush.msra.mxu0 %v330
        %352 = vmatpush.msra.mxu0 %v329
        %353 = vmatpush.msra.mxu0 %v328
        %354 = vmatpush.msra.mxu0 %v327
        %355 = vmatpush.msra.mxu0 %v326
        %356 = vmatpush.msra.mxu0 %v325
        %357 = vmatmul.f32.gmra.mxu0 %v317
        %v358 = vpop.f32.mrf.mxu0
        %v359 = vadd.f32 0.0, %v358
        %360 = vmatmul.f32.gmra.mxu0 %v318
        %v361 = vpop.f32.mrf.mxu0
        %v362 = vadd.f32 0.0, %v361
        %363 = vmatmul.f32.gmra.mxu0 %v319
        %v364 = vpop.f32.mrf.mxu0
        %v365 = vadd.f32 0.0, %v364
        %366 = vmatmul.f32.gmra.mxu0 %v320
        %v367 = vpop.f32.mrf.mxu0
        %v368 = vadd.f32 0.0, %v367
        %369 = vmatmul.f32.gmra.mxu0 %v321
        %v370 = vpop.f32.mrf.mxu0
        %v371 = vadd.f32 0.0, %v370
        %372 = vmatmul.f32.gmra.mxu0 %v322
        %v373 = vpop.f32.mrf.mxu0
        %v374 = vadd.f32 0.0, %v373
        %375 = vmatmul.f32.gmra.mxu0 %v323
        %v376 = vpop.f32.mrf.mxu0
        %v377 = vadd.f32 0.0, %v376
        %378 = vmatmul.f32.gmra.mxu0 %v324
        %v379 = vpop.f32.mrf.mxu0
        %v380 = vadd.f32 0.0, %v379
        %381 = vdwg.mxu0
        %v382 = vadd.f32 %v309, %v359
        %v383 = vadd.f32 %v310, %v362
        %v384 = vadd.f32 %v311, %v365
        %v385 = vadd.f32 %v312, %v368
        %v386 = vadd.f32 %v313, %v371
        %v387 = vadd.f32 %v314, %v374
        %v388 = vadd.f32 %v315, %v377
        %v389 = vadd.f32 %v316, %v380
        %390 = vst [vmem:[#allocation2] sm:$0xff] %v382
        %391 = vst [vmem:[#allocation2 + $0x8] sm:$0xff] %v383
        %392 = vst [vmem:[#allocation2 + $0x10] sm:$0xff] %v384
        %393 = vst [vmem:[#allocation2 + $0x18] sm:$0xff] %v385
        %394 = vst [vmem:[#allocation2 + $0x20] sm:$0xff] %v386
        %395 = vst [vmem:[#allocation2 + $0x28] sm:$0xff] %v387
        %396 = vst [vmem:[#allocation2 + $0x30] sm:$0xff] %v388
        %397 = vst [vmem:[#allocation2 + $0x38] sm:$0xff] %v389
        %p398 = scmp.eq.s32.totalorder %s30, 1
        // Predicated region
        $region49: #{tpu_custom_call.1} parent=31 // pred_check
          %p399 = pneg %p398
        $region50: #{tpu_custom_call.1} parent=31 // pred_check_branch
          %401 = sbr.rel (%p399) target = $region52
        $region51: #{tpu_custom_call.1} parent=31 // pred_region
          %v402 = vld [vmem:[#allocation2] sm:$0xff]
          %v403 = vld [vmem:[#allocation2 + $0x8] sm:$0xff]
          %v404 = vld [vmem:[#allocation2 + $0x10] sm:$0xff]
          %v405 = vld [vmem:[#allocation2 + $0x18] sm:$0xff]
          %v406 = vld [vmem:[#allocation2 + $0x20] sm:$0xff]
          %v407 = vld [vmem:[#allocation2 + $0x28] sm:$0xff]
          %v408 = vld [vmem:[#allocation2 + $0x30] sm:$0xff]
          %v409 = vld [vmem:[#allocation2 + $0x38] sm:$0xff]
          %v410 = vld [vmem:[%s261] sm:$0x1]
          %v412 = vperm.slane %v410, 0
          %v414 = vadd.f32 %v402, %v412
          %v415 = vadd.f32 %v403, %v412
          %v416 = vadd.f32 %v404, %v412
          %v417 = vadd.f32 %v405, %v412
          %v418 = vadd.f32 %v406, %v412
          %v419 = vadd.f32 %v407, %v412
          %v420 = vadd.f32 %v408, %v412
          %v421 = vadd.f32 %v409, %v412
          %422 = vst [vmem:[%s293] sm:$0xff] %v414
          %423 = vst [vmem:[%s293 + $0x8] sm:$0xff] %v415
          %424 = vst [vmem:[%s293 + $0x10] sm:$0xff] %v416
          %425 = vst [vmem:[%s293 + $0x18] sm:$0xff] %v417
          %426 = vst [vmem:[%s293 + $0x20] sm:$0xff] %v418
          %427 = vst [vmem:[%s293 + $0x28] sm:$0xff] %v419
          %428 = vst [vmem:[%s293 + $0x30] sm:$0xff] %v420
          %429 = vst [vmem:[%s293 + $0x38] sm:$0xff] %v421
        $region52: #{tpu_custom_call.1} parent=31 // pred_fallthru
          _
        %s430 = sand.u32 %s134, 1
        %s431 = scalar_lea.sflag [#allocation5], %s430
        %s432 = sand.u32 %s134, 1
        %s433 = smul.addr %s432, 64
        %s434 = scalar_lea.vmem [#allocation9], %s433
        // Predicated region
        $region53: #{tpu_custom_call.1} parent=31 // pred_check
          %p435 = pneg %p144
        $region54: #{tpu_custom_call.1} parent=31 // pred_check_branch
          %437 = sbr.rel (%p435) target = $region56
        $region55: #{tpu_custom_call.1} parent=31 // pred_region
          %s438 = smul.u32 8, %s28
          %440 = vsyncadd %s431, 0
          %s441 = smul.addr %s438, 2
          %s442 = sadd.s32 %s29, %s441
          %s443 = smul.addr %s442, 8
          %s444 = scalar_lea.hbm %s3, %s443
          %s445 = sshll.u32 %s434, 4
          %s446 = int_to_ptr.vmem [resolvable:$true] %s445
          %s447 = sshll.u32 %s444, 4
          %s448 = int_to_ptr.hbm [resolvable:$true] %s447
          %453 = dma.vmem_to_hbm [thread:$0]  %s446, 1024, %s448, %s431, 128, 256, 8
        $region56: #{tpu_custom_call.1} parent=31 // pred_fallthru
          _
      $region32: #{tpu_custom_call.1} parent=5 // pred_fallthru
        _
      %p454 = scmp.le.s32.totalorder 2, %s18
      // Predicated region
      $region57: #{tpu_custom_call.1} parent=5 // pred_check
        %p455 = pneg %p454
      $region58: #{tpu_custom_call.1} parent=5 // pred_check_branch
        %457 = sbr.rel (%p455) target = $region60
      $region59: #{tpu_custom_call.1} parent=5 // pred_region
        %s458 = ssub.s32 %s18, 2
        // Predicated region
        $region61: #{tpu_custom_call.1} parent=59 // pred_check
          %p459 = pneg %p150
        $region62: #{tpu_custom_call.1} parent=59 // pred_check_branch
          %461 = sbr.rel (%p459) target = $region64
        $region63: #{tpu_custom_call.1} parent=59 // pred_region
          %s462 = sand.u32 %s135, 1
          %s463 = scalar_lea.sflag [#allocation5], %s462
          %s464 = sand.u32 %s135, 1
          %s465 = smul.addr %s464, 64
          %s466 = scalar_lea.vmem [#allocation9], %s465
          %468 = dma.done %s463, 1024
        $region64: #{tpu_custom_call.1} parent=59 // pred_fallthru
          _
      $region60: #{tpu_custom_call.1} parent=5 // pred_fallthru
        _
    $region6: #{tpu_custom_call.1} parent=1 // loop_footer
      %s22 = sadd.s32 1, %s18
    $region7: #{tpu_custom_call.1} parent=1 // loop_footer_branch
      %17 = sbr.rel target = $region3
    $region8: #{tpu_custom_call.1} parent=1 // loop_exit
      _
    %469 = vsyncpa [#allocation4], 1
    %s470 = scalar_lea.sflag [#allocation4], 1
    %471 = vsyncpa %s470, 1
    %472 = vsyncpa [#allocation7], 1
    %s473 = scalar_lea.sflag [#allocation7], 1
    %474 = vsyncpa %s473, 1
    %475 = vsyncpa [#allocation5], 1
    %s476 = scalar_lea.sflag [#allocation5], 1
    %477 = vsyncpa %s476, 1

</llo_original>
